<compile_context>
chip_gen: v7x
topology: tpu7x:2x2x1
jax: 0.10.0
libtpu: 0.0.40
codegen_flags: <defaults>
</compile_context>

<pallas_src>
import jax
import jax.numpy as jnp
from jax import lax
from jax.experimental import pallas as pl
from jax.experimental.pallas import tpu as pltpu


_LANE = 128                 # TPU lane width
_SUB = 512                  # inner sub-chunk width (vreg-resident compute granularity)
_BLOCK_BUDGET = 12 << 20    # target bytes for the double-buffered x+t blocks per step


def _round_up(x, m):
    return -(-x // m) * m


def _plan_tiling(hw, c_in, c_out, itemsize, n_batch, tile_override=None):
    """Pick (tile_hw, sub, hw_pad, n_chunks, n_steps) for the HW reduction."""
    if tile_override is not None:
        tile = int(tile_override)
        assert tile % _LANE == 0 and (tile < _SUB or tile % _SUB == 0), tile
    else:
        # Double-buffered x + t block bytes per lane of spatial extent.
        bytes_per_lane = 2 * (c_in + c_out) * itemsize
        cap = max(_SUB, (_BLOCK_BUDGET // bytes_per_lane) // _SUB * _SUB)
        hw_align = _round_up(hw, _LANE)
        if hw_align <= cap:
            tile = hw_align if hw_align <= _SUB else _round_up(hw_align, _SUB)
        else:
            # Prefer an exact divisor of HW (no padding / no mask) if a reasonably
            # large one exists; otherwise fall back to a padded + masked tail.
            tile = 0
            t = cap
            while t >= max(_SUB, cap // 4):
                if hw % t == 0:
                    tile = t
                    break
                t -= _SUB
            if tile == 0:
                tile = cap
    hw_pad = _round_up(hw, tile)
    n_tiles = hw_pad // tile
    # Extra parallel HW-chunk axis keeps both v7x TensorCores busy when N is small.
    if n_batch >= 2 or n_tiles == 1:
        n_chunks = 1
    elif n_tiles % 2 == 0:
        n_chunks = 2
    else:
        n_chunks = n_tiles
    n_steps = n_tiles // n_chunks
    sub = min(_SUB, tile)
    assert tile % sub == 0
    return tile, sub, hw_pad, n_chunks, n_steps


def _make_kernel(c_in, c_out, tile_hw, sub, hw_valid, mask_tail):
    """Build the fused conv1x1 + sum-of-squared-errors kernel for fixed static sizes."""
    n_sub = tile_hw // sub

    def kernel(w_ref, b_ref, x_ref, t_ref, out_ref, acc_ref):
        # w_ref: (c_out, c_in)   b_ref: (c_out, 1)
        # x_ref: (c_in, tile_hw) t_ref: (c_out, tile_hw)   (lane-dense last dim)
        # out_ref: (c_out, sub)  per-(batch, chunk) partial sums (reduced on host)
        # acc_ref: (c_out, sub)  f32 vector accumulator, resident across the s axis
        s = pl.program_id(2)

        @pl.when(s == 0)
        def _init():
            acc_ref[...] = jnp.zeros_like(acc_ref)

        w = w_ref[...].astype(jnp.float32)                        # (c_out, c_in)
        bias_b = jnp.broadcast_to(
            b_ref[...].astype(jnp.float32), (c_out, sub))         # hoisted bias bcast
        if mask_tail:
            tile_base = (pl.program_id(1) * pl.num_programs(2) + s) * tile_hw

        # Consume the big DMA block in vreg-sized sub-chunks: all elementwise
        # intermediates stay in registers; only the small accumulator touches VMEM.
        @pl.loop(0, n_sub)
        def _sub_chunk(j):
            start = pl.multiple_of(j * sub, sub)
            x = x_ref[:, pl.ds(start, sub)].astype(jnp.float32)     # (c_in, sub)
            tgt = t_ref[:, pl.ds(start, sub)].astype(jnp.float32)   # (c_out, sub)

            # model forward: 1x1 conv == c_in broadcast FMAs on the VPU
            pred = bias_b
            for ci in range(c_in):                                  # static unroll
                pred = pred + w[:, ci:ci + 1] * x[ci:ci + 1, :]

            diff = pred - tgt
            d2 = diff * diff
            if mask_tail:                                           # static python bool
                col = tile_base + start + lax.broadcasted_iota(
                    jnp.int32, (c_out, sub), 1)
                d2 = jnp.where(col < hw_valid, d2, 0.0)
            acc_ref[...] = acc_ref[...] + d2

        @pl.when(s == pl.num_programs(2) - 1)
        def _finalize():
            out_ref[...] = acc_ref[...]

    return kernel


def netwithloss(images, targets, weight, bias, *, tile_hw=None):
    """Fused model-forward + MSE loss.

    images:  (N, C_in, H, W)  NCHW, f32 or bf16
    targets: (N, C_out, H, W) NCHW, f32 or bf16
    weight:  (C_out, C_in)    1x1-conv weight (torch layout with the 1x1 squeezed)
    bias:    (C_out,)
    Returns scalar f32 mean-squared-error loss.
    """
    N, C_in, H, W = images.shape
    C_out = weight.shape[0]
    assert weight.shape == (C_out, C_in)
    assert targets.shape == (N, C_out, H, W)
    HW = H * W

    # Free reshapes only (NCHW is contiguous as (N, C, H*W)) -- no transposes.
    x = images.reshape(N, C_in, HW)
    t = targets.reshape(N, C_out, HW)
    b_col = bias.reshape(C_out, 1)

    tile, sub, hw_pad, n_chunks, n_steps = _plan_tiling(
        HW, C_in, C_out, x.dtype.itemsize, N, tile_override=tile_hw)
    mask_tail = hw_pad != HW
    if mask_tail:
        # Zero-pad the spatial tail; the in-kernel iota mask zeroes its contribution.
        x = jnp.pad(x, ((0, 0), (0, 0), (0, hw_pad - HW)))
        t = jnp.pad(t, ((0, 0), (0, 0), (0, hw_pad - HW)))

    # Double-buffered x + t blocks; give generous headroom but never exceed what any
    # generation can back physically (v7x: 64 MiB).
    block_bytes = 2 * (C_in + C_out) * tile * x.dtype.itemsize
    vmem_limit = int(min(max(2 * block_bytes + (4 << 20), 16 << 20), 48 << 20))

    kernel = _make_kernel(C_in, C_out, tile, sub, HW, mask_tail)

    partial = pl.pallas_call(
        kernel,
        out_shape=jax.ShapeDtypeStruct((N, n_chunks, C_out, sub), jnp.float32),
        grid=(N, n_chunks, n_steps),
        in_specs=[
            pl.BlockSpec((C_out, C_in), lambda n, c, s: (0, 0)),
            pl.BlockSpec((C_out, 1), lambda n, c, s: (0, 0)),
            pl.BlockSpec((pl.Squeezed(), C_in, tile),
                         lambda n, c, s: (n, 0, c * n_steps + s)),
            pl.BlockSpec((pl.Squeezed(), C_out, tile),
                         lambda n, c, s: (n, 0, c * n_steps + s)),
        ],
        out_specs=pl.BlockSpec((pl.Squeezed(), pl.Squeezed(), C_out, sub),
                               lambda n, c, s: (n, c, 0, 0)),
        scratch_shapes=[pltpu.VMEM((C_out, sub), jnp.float32)],
        compiler_params=pltpu.CompilerParams(
            dimension_semantics=("parallel", "parallel", "arbitrary"),
            vmem_limit_bytes=vmem_limit),
    )(weight, b_col, x, t)

    # Combine the tiny per-(batch, chunk) partial sums and scale by the precomputed
    # reciprocal of the GLOBAL (unpadded) element count.
    inv_n_elems = 1.0 / float(N * C_out * HW)
    return jnp.sum(partial) * inv_n_elems


def _reference(images, targets, weight, bias):
    # Pure-JAX reference (same semantics as torch: F.conv2d(x, w[C_out,C_in,1,1], b)
    # followed by F.mse_loss(pred, targets)).
    N, C_in, H, W = images.shape
    x = images.reshape(N, C_in, H * W).astype(jnp.float32)
    pred = (jnp.einsum("oc,nch->noh", weight.astype(jnp.float32), x)
            + bias.astype(jnp.float32).reshape(1, -1, 1))
    tgt = targets.reshape(N, weight.shape[0], H * W).astype(jnp.float32)
    return jnp.mean((pred - tgt) ** 2)


if __name__ == "__main__":
    key = jax.random.PRNGKey(0)
    k_img, k_tgt, k_w, k_b = jax.random.split(key, 4)

    N, C_in, C_out, H, W = 2, 4, 8, 16, 16

    images = jax.random.normal(k_img, (N, C_in, H, W), dtype=jnp.float32)
    targets = jax.random.normal(k_tgt, (N, C_out, H, W), dtype=jnp.float32)

    # Deterministic "model" parameters (Conv2d(4, 8, 1) equivalent; torch weight
    # (C_out, C_in, 1, 1) with the trailing 1x1 squeezed).
    weight = jax.random.normal(k_w, (C_out, C_in), dtype=jnp.float32) * 0.1
    bias = jax.random.normal(k_b, (C_out,), dtype=jnp.float32) * 0.1

    ref = jax.block_until_ready(_reference(images, targets, weight, bias))

    # 1) tile_hw=128 override -> grid (2, 1, 2): exercises the multi-step resident
    #    accumulator path.
    loss = jax.block_until_ready(
        netwithloss(images, targets, weight, bias, tile_hw=128))
    assert jnp.allclose(loss, ref, rtol=1e-5, atol=1e-5), (loss, ref)

    # 2) default auto-tiling (single MiB-capped tile, grid (2, 1, 1)).
    loss2 = jax.block_until_ready(netwithloss(images, targets, weight, bias))
    assert jnp.allclose(loss2, ref, rtol=1e-5, atol=1e-5), (loss2, ref)

    # 3) non-128-divisible spatial extent with N=1 -> padded + masked tail path.
    H2 = W2 = 13
    img2 = jax.random.normal(k_img, (1, C_in, H2, W2), dtype=jnp.float32)
    tgt2 = jax.random.normal(k_tgt, (1, C_out, H2, W2), dtype=jnp.float32)
    loss3 = jax.block_until_ready(netwithloss(img2, tgt2, weight, bias))
    ref3 = jax.block_until_ready(_reference(img2, tgt2, weight, bias))
    assert jnp.allclose(loss3, ref3, rtol=1e-5, atol=1e-5), (loss3, ref3)

    print("KERNEL_OK")
</pallas_src>

<mosaic_0001>
module attributes {stable_mosaic.version = 11 : i64} {
  func.func @kernel(%arg0: i32, %arg1: i32, %arg2: i32, %arg3: memref<8x4xf32, #tpu.memory_space<vmem>>, %arg4: memref<8x1xf32, #tpu.memory_space<vmem>>, %arg5: memref<1x4x128xf32, #tpu.memory_space<vmem>>, %arg6: memref<1x8x128xf32, #tpu.memory_space<vmem>>, %arg7: memref<1x1x8x128xf32, #tpu.memory_space<vmem>>, %arg8: memref<8x128xf32, #tpu.memory_space<vmem>>) attributes {dimension_semantics = [#tpu.dimension_semantics<parallel>, #tpu.dimension_semantics<parallel>, #tpu.dimension_semantics<arbitrary>], iteration_bounds = array<i64: 2, 1, 2>, scalar_prefetch = 0 : i64, scratch_operands = 1 : i64, tpu.core_type = #tpu.core_type<tc>, window_params = [{pipeline_mode = #tpu.pipeline_mode<synchronous>, transform_indices = @transform_0, window_bounds = array<i64: 8, 4>}, {pipeline_mode = #tpu.pipeline_mode<synchronous>, transform_indices = @transform_1, window_bounds = array<i64: 8, 1>}, {transform_indices = @transform_2, window_bounds = array<i64: 1, 4, 128>}, {transform_indices = @transform_3, window_bounds = array<i64: 1, 8, 128>}, {transform_indices = @transform_4, window_bounds = array<i64: 1, 1, 8, 128>}]} {
    %c0_i32 = arith.constant 0 : i32
    %0 = arith.cmpi eq, %arg2, %c0_i32 : i32
    %1 = arith.extui %0 : i1 to i32
    %c0_i32_0 = arith.constant 0 : i32
    %2 = arith.cmpi ne, %1, %c0_i32_0 : i32
    scf.if %2 {
      %cst = arith.constant 0.000000e+00 : f32
      %49 = vector.broadcast %cst : f32 to vector<8x128xf32>
      %c0_17 = arith.constant 0 : index
      %c0_18 = arith.constant 0 : index
      %50 = vector.load %arg8[%c0_17, %c0_18] : memref<8x128xf32, #tpu.memory_space<vmem>>, vector<8x128xf32>
      tpu.vector_store %arg8[%c0_17, %c0_18], %49 {strides = array<i32>} : memref<8x128xf32, #tpu.memory_space<vmem>>, vector<8x128xf32>,
    } else {
    }
    %c0 = arith.constant 0 : index
    %c0_1 = arith.constant 0 : index
    %3 = vector.load %arg3[%c0, %c0_1] : memref<8x4xf32, #tpu.memory_space<vmem>>, vector<8x4xf32>
    %c0_2 = arith.constant 0 : index
    %c0_3 = arith.constant 0 : index
    %4 = vector.load %arg4[%c0_2, %c0_3] : memref<8x1xf32, #tpu.memory_space<vmem>>, vector<8x1xf32>
    %5 = vector.shape_cast %4 : vector<8x1xf32> to vector<8x1xf32>
    %6 = vector.broadcast %5 : vector<8x1xf32> to vector<8x128xf32>
    %c0_i32_4 = arith.constant 0 : i32
    %c1_i32 = arith.constant 1 : i32
    %7 = arith.muli %c0_i32_4, %c1_i32 : i32
    %c0_i32_5 = arith.constant 0 : i32
    %8 = arith.addi %c0_i32_5, %7 : i32
    %c128_i32 = arith.constant 128 : i32
    %9 = arith.muli %8, %c128_i32 : i32
    %10 = tpu.assume_multiple %9, 128 : i32
    %c0_6 = arith.constant 0 : index
    %c0_7 = arith.constant 0 : index
    %11 = arith.index_cast %10 : i32 to index
    %12 = vector.load %arg5[%c0_6, %c0_7, %11] : memref<1x4x128xf32, #tpu.memory_space<vmem>>, vector<1x4x128xf32>
    %13 = vector.shape_cast %12 : vector<1x4x128xf32> to vector<4x128xf32>
    %c0_8 = arith.constant 0 : index
    %c0_9 = arith.constant 0 : index
    %14 = arith.index_cast %10 : i32 to index
    %15 = vector.load %arg6[%c0_8, %c0_9, %14] : memref<1x8x128xf32, #tpu.memory_space<vmem>>, vector<1x8x128xf32>
    %16 = vector.shape_cast %15 : vector<1x8x128xf32> to vector<8x128xf32>
    %17 = vector.extract_strided_slice %3 {offsets = [0, 0], sizes = [8, 1], strides = [1, 1]} : vector<8x4xf32> to vector<8x1xf32>
    %18 = vector.extract_strided_slice %13 {offsets = [0, 0], sizes = [1, 128], strides = [1, 1]} : vector<4x128xf32> to vector<1x128xf32>
    %19 = vector.broadcast %17 : vector<8x1xf32> to vector<8x128xf32>
    %20 = vector.broadcast %18 : vector<1x128xf32> to vector<8x128xf32>
    %21 = arith.mulf %19, %20 : vector<8x128xf32>
    %22 = arith.addf %6, %21 : vector<8x128xf32>
    %23 = vector.extract_strided_slice %3 {offsets = [0, 1], sizes = [8, 1], strides = [1, 1]} : vector<8x4xf32> to vector<8x1xf32>
    %24 = vector.extract_strided_slice %13 {offsets = [1, 0], sizes = [1, 128], strides = [1, 1]} : vector<4x128xf32> to vector<1x128xf32>
    %25 = vector.broadcast %23 : vector<8x1xf32> to vector<8x128xf32>
    %26 = vector.broadcast %24 : vector<1x128xf32> to vector<8x128xf32>
    %27 = arith.mulf %25, %26 : vector<8x128xf32>
    %28 = arith.addf %22, %27 : vector<8x128xf32>
    %29 = vector.extract_strided_slice %3 {offsets = [0, 2], sizes = [8, 1], strides = [1, 1]} : vector<8x4xf32> to vector<8x1xf32>
    %30 = vector.extract_strided_slice %13 {offsets = [2, 0], sizes = [1, 128], strides = [1, 1]} : vector<4x128xf32> to vector<1x128xf32>
    %31 = vector.broadcast %29 : vector<8x1xf32> to vector<8x128xf32>
    %32 = vector.broadcast %30 : vector<1x128xf32> to vector<8x128xf32>
    %33 = arith.mulf %31, %32 : vector<8x128xf32>
    %34 = arith.addf %28, %33 : vector<8x128xf32>
    %35 = vector.extract_strided_slice %3 {offsets = [0, 3], sizes = [8, 1], strides = [1, 1]} : vector<8x4xf32> to vector<8x1xf32>
    %36 = vector.extract_strided_slice %13 {offsets = [3, 0], sizes = [1, 128], strides = [1, 1]} : vector<4x128xf32> to vector<1x128xf32>
    %37 = vector.broadcast %35 : vector<8x1xf32> to vector<8x128xf32>
    %38 = vector.broadcast %36 : vector<1x128xf32> to vector<8x128xf32>
    %39 = arith.mulf %37, %38 : vector<8x128xf32>
    %40 = arith.addf %34, %39 : vector<8x128xf32>
    %41 = arith.subf %40, %16 : vector<8x128xf32>
    %42 = arith.mulf %41, %41 : vector<8x128xf32>
    %c0_10 = arith.constant 0 : index
    %c0_11 = arith.constant 0 : index
    %43 = vector.load %arg8[%c0_10, %c0_11] : memref<8x128xf32, #tpu.memory_space<vmem>>, vector<8x128xf32>
    %44 = arith.addf %43, %42 : vector<8x128xf32>
    %c0_12 = arith.constant 0 : index
    %c0_13 = arith.constant 0 : index
    %45 = vector.load %arg8[%c0_12, %c0_13] : memref<8x128xf32, #tpu.memory_space<vmem>>, vector<8x128xf32>
    tpu.vector_store %arg8[%c0_12, %c0_13], %44 {strides = array<i32>} : memref<8x128xf32, #tpu.memory_space<vmem>>, vector<8x128xf32>,
    %c1_i32_14 = arith.constant 1 : i32
    %c1_i32_15 = arith.constant 1 : i32
    %46 = arith.cmpi eq, %arg2, %c1_i32_15 : i32
    %47 = arith.extui %46 : i1 to i32
    %c0_i32_16 = arith.constant 0 : i32
    %48 = arith.cmpi ne, %47, %c0_i32_16 : i32
    scf.if %48 {
      %c0_17 = arith.constant 0 : index
      %c0_18 = arith.constant 0 : index
      %49 = vector.load %arg8[%c0_17, %c0_18] : memref<8x128xf32, #tpu.memory_space<vmem>>, vector<8x128xf32>
      %c0_19 = arith.constant 0 : index
      %c0_20 = arith.constant 0 : index
      %c0_21 = arith.constant 0 : index
      %c0_22 = arith.constant 0 : index
      %50 = vector.load %arg7[%c0_19, %c0_20, %c0_21, %c0_22] : memref<1x1x8x128xf32, #tpu.memory_space<vmem>>, vector<1x1x8x128xf32>
      %51 = vector.shape_cast %50 : vector<1x1x8x128xf32> to vector<8x128xf32>
      %52 = vector.shape_cast %49 : vector<8x128xf32> to vector<1x1x8x128xf32>
      tpu.vector_store %arg7[%c0_19, %c0_20, %c0_21, %c0_22], %52 {strides = array<i32>} : memref<1x1x8x128xf32, #tpu.memory_space<vmem>>, vector<1x1x8x128xf32>,
    } else {
    }
    return
  }
  func.func @transform_0(%arg0: i32, %arg1: i32, %arg2: i32) -> (i32, i32) {
    %c0_i32 = arith.constant 0 : i32
    %c0_i32_0 = arith.constant 0 : i32
    %c0_i32_1 = arith.constant 0 : i32
    return %c0_i32, %c0_i32_0 : i32, i32
  }
  func.func @transform_1(%arg0: i32, %arg1: i32, %arg2: i32) -> (i32, i32) {
    %c0_i32 = arith.constant 0 : i32
    %c0_i32_0 = arith.constant 0 : i32
    %c0_i32_1 = arith.constant 0 : i32
    return %c0_i32, %c0_i32_0 : i32, i32
  }
  func.func @transform_2(%arg0: i32, %arg1: i32, %arg2: i32) -> (i32, i32, i32) {
    %c2_i32 = arith.constant 2 : i32
    %0 = arith.muli %arg1, %c2_i32 : i32
    %1 = arith.addi %0, %arg2 : i32
    %c0_i32 = arith.constant 0 : i32
    %c0_i32_0 = arith.constant 0 : i32
    return %arg0, %c0_i32, %1 : i32, i32, i32
  }
  func.func @transform_3(%arg0: i32, %arg1: i32, %arg2: i32) -> (i32, i32, i32) {
    %c2_i32 = arith.constant 2 : i32
    %0 = arith.muli %arg1, %c2_i32 : i32
    %1 = arith.addi %0, %arg2 : i32
    %c0_i32 = arith.constant 0 : i32
    %c0_i32_0 = arith.constant 0 : i32
    return %arg0, %c0_i32, %1 : i32, i32, i32
  }
  func.func @transform_4(%arg0: i32, %arg1: i32, %arg2: i32) -> (i32, i32, i32, i32) {
    %c0_i32 = arith.constant 0 : i32
    %c0_i32_0 = arith.constant 0 : i32
    %c0_i32_1 = arith.constant 0 : i32
    return %arg0, %arg1, %c0_i32, %c0_i32_0 : i32, i32, i32, i32
  }
}

</mosaic_0001>

<llo_original>
// kernel: tpu_custom_call.1
$region0: #{tpu_custom_call.1}
  #allocation0 [shape = 'u32[]', space=smem, size = 0x4, offset = 0x4, fixed_abs, tag = 'smem constant byte address 0x4 - core index']
  #allocation1 [shape = 'u32[144,128]{1,0:T(1,128)}', space=vmem, size = 0x12000, scoped, tag = 'internal scratch']
  #allocation2 [shape = 'f32[8,128]{1,0:T(8,128)}', space=vmem, size = 0x1000, scoped, tag = 'scratch operand']
  %s0 = inlined_call_operand.vmem [shape: f32[8,4], index: 0, kind: input, shape index: {}]
  %s1 = inlined_call_operand.vmem [shape: f32[8,1], index: 1, kind: input, shape index: {}]
  %s2 = inlined_call_operand.hbm [shape: f32[2,4,256], index: 2, kind: input, shape index: {}]
  %s3 = inlined_call_operand.vmem [shape: f32[2,8,256], index: 3, kind: input, shape index: {}]
  %s4 = inlined_call_operand.hbm [shape: f32[2,1,8,128], index: 4, kind: output, shape index: {}]
  %s5 = sld [smem:[#allocation0]]
  $region61: #{tpu_custom_call.1} parent=0
    _
  %s7 = ssub.s32 1, %s5
  %s8 = scalar_select 0, %s7, %s5
  $region1: #{tpu_custom_call.1} parent=0
    #allocation3 [shape = 'u8[4096]{0}', space=vmem, size = 0x1000, scoped, tag = 'input window, operand 2']
    #allocation4 [shape = 's32[2]{0}', space=sflag, size = 0x8, scoped, tag = 'scoped memory for tpu_custom_call.1']
    #allocation5 [shape = 's32[2]{0}', space=sflag, size = 0x8, scoped, tag = 'scoped memory for tpu_custom_call.1']
    #allocation6 [shape = 'u8[8192]{0}', space=vmem, size = 0x2000, scoped, tag = 'output window, operand 0']
    %9 = vsyncpa [#allocation4], 0
    %s10 = scalar_lea.sflag [#allocation4], 1
    %11 = vsyncpa %s10, 0
    %12 = vsyncpa [#allocation5], 0
    %s13 = scalar_lea.sflag [#allocation5], 1
    %14 = vsyncpa %s13, 0
    loop: start=0, step=1, limit=6
    $region2: #{tpu_custom_call.1} parent=1 // loop_pre_header
      _
    $region3: #{tpu_custom_call.1} parent=1 // loop_header
      %s16 = sphi 0, %s20
      %p17 = scmp.ge.s32.totalorder %s16, 6
      %s23 = sphi 0, %s42
      %s24 = sphi 0, %s38
      %s25 = sphi 0, %s34
      %s26 = sphi 0, %s23
      %s27 = sphi 0, %s24
      %s28 = sphi 0, %s25
      %s29 = sphi 0, %s26
      %s30 = sphi 0, %s27
      %s31 = sphi 0, %s28
      %s43 = sphi 0, %s43
      %s45 = sphi 0, %s43
      %s46 = sphi 0, %s45
      %s60 = sphi 0, %s46
      %s64 = sphi 0, %s64
      %s66 = sphi 0, %s64
      %s67 = sphi 0, %s66
      %s81 = sphi 0, %s67
      %s93 = sphi 0, %s95
      %s96 = sphi 0, %s93
      %s97 = sphi 0, %s96
      %s113 = sphi 0, %s97
      %s125 = sphi 0, %s127
      %s128 = sphi 0, %s125
      %s129 = sphi 0, %s128
      %s145 = sphi 0, %s129
      %s153 = sphi 0, %s155
      %s156 = sphi 0, %s153
      %s157 = sphi 0, %s156
      %s173 = sphi 0, %s157
    $region4: #{tpu_custom_call.1} parent=1 // loop_header_branch
      %19 = sbr.rel (%p17) target = $region8
    $region5: #{tpu_custom_call.1} parent=1 // loop_body
      %s21 = ssub.s32 %s16, 1
      %s22 = ssub.s32 %s16, 2
      %s32 = sadd.s32 1, %s25
      %p33 = scmp.ge.s32.totalorder %s32, 2
      %s34 = scalar_select %p33, 0, %s32
      %s35 = sadd.s32 1, %s24
      %s36 = scalar_select %p33, %s35, %s24
      %p37 = scmp.ge.s32.totalorder %s36, 1
      %s38 = scalar_select %p37, 0, %s36
      %s39 = sadd.s32 1, %s23
      %s40 = scalar_select %p37, %s39, %s23
      %p41 = scmp.ge.s32.totalorder %s40, 2
      %s42 = scalar_select %p41, 0, %s40
      %s44 = sadd.s32 %s43, 1
      %p47 = scmp.eq.s32.totalorder %s16, 3
      %p48 = scmp.ne.s32.totalorder %s43, %s45
      %p49 = scmp.eq.s32.totalorder %s16, 0
      %p50 = por %p48, %p49
      %p51 = scmp.ne.s32.totalorder %s43, %s45
      %p52 = scmp.eq.s32.totalorder %s21, 3
      %p53 = por %p51, %p52
      %p54 = scmp.ne.s32.totalorder %s45, %s46
      %p55 = scmp.eq.s32.totalorder %s21, 0
      %p56 = por %p54, %p55
      %p57 = scmp.ne.s32.totalorder %s45, %s46
      %p58 = scmp.eq.s32.totalorder %s22, 3
      %p59 = por %p57, %p58
      %p61 = scmp.ne.s32.totalorder %s46, %s60
      %p62 = scmp.eq.s32.totalorder %s22, 0
      %p63 = por %p61, %p62
      %s65 = sadd.s32 %s64, 1
      %p68 = scmp.eq.s32.totalorder %s16, 3
      %p69 = scmp.ne.s32.totalorder %s64, %s66
      %p70 = scmp.eq.s32.totalorder %s16, 0
      %p71 = por %p69, %p70
      %p72 = scmp.ne.s32.totalorder %s64, %s66
      %p73 = scmp.eq.s32.totalorder %s21, 3
      %p74 = por %p72, %p73
      %p75 = scmp.ne.s32.totalorder %s66, %s67
      %p76 = scmp.eq.s32.totalorder %s21, 0
      %p77 = por %p75, %p76
      %p78 = scmp.ne.s32.totalorder %s66, %s67
      %p79 = scmp.eq.s32.totalorder %s22, 3
      %p80 = por %p78, %p79
      %p82 = scmp.ne.s32.totalorder %s67, %s81
      %p83 = scmp.eq.s32.totalorder %s22, 0
      %p84 = por %p82, %p83
      %s85 = smul.u32 %s24, 2
      %s86 = sadd.s32 %s85, %s25
      %s87 = smul.u32 %s38, 2
      %s88 = sadd.s32 %s87, %s34
      %s89 = ssub.s32 %s23, %s42
      %s90 = ssub.s32 %s86, %s88
      %s91 = sor.u32 %s89, %s90
      %p92 = scmp.eq.s32.totalorder %s91, 0
      %s94 = sadd.s32 %s93, 1
      %s95 = scalar_select %p92, %s93, %s94
      %p98 = pneg %p92
      %p99 = scmp.eq.s32.totalorder %s16, 3
      %p100 = por %p98, %p99
      %p101 = scmp.ne.s32.totalorder %s93, %s96
      %p102 = scmp.eq.s32.totalorder %s16, 0
      %p103 = por %p101, %p102
      %p104 = scmp.ne.s32.totalorder %s93, %s96
      %p105 = scmp.eq.s32.totalorder %s21, 3
      %p106 = por %p104, %p105
      %p107 = scmp.ne.s32.totalorder %s96, %s97
      %p108 = scmp.eq.s32.totalorder %s21, 0
      %p109 = por %p107, %p108
      %p110 = scmp.ne.s32.totalorder %s96, %s97
      %p111 = scmp.eq.s32.totalorder %s22, 3
      %p112 = por %p110, %p111
      %p114 = scmp.ne.s32.totalorder %s97, %s113
      %p115 = scmp.eq.s32.totalorder %s22, 0
      %p116 = por %p114, %p115
      %s117 = smul.u32 %s24, 2
      %s118 = sadd.s32 %s117, %s25
      %s119 = smul.u32 %s38, 2
      %s120 = sadd.s32 %s119, %s34
      %s121 = ssub.s32 %s23, %s42
      %s122 = ssub.s32 %s118, %s120
      %s123 = sor.u32 %s121, %s122
      %p124 = scmp.eq.s32.totalorder %s123, 0
      %s126 = sadd.s32 %s125, 1
      %s127 = scalar_select %p124, %s125, %s126
      %p130 = pneg %p124
      %p131 = scmp.eq.s32.totalorder %s16, 3
      %p132 = por %p130, %p131
      %p133 = scmp.ne.s32.totalorder %s125, %s128
      %p134 = scmp.eq.s32.totalorder %s16, 0
      %p135 = por %p133, %p134
      %p136 = scmp.ne.s32.totalorder %s125, %s128
      %p137 = scmp.eq.s32.totalorder %s21, 3
      %p138 = por %p136, %p137
      %p139 = scmp.ne.s32.totalorder %s128, %s129
      %p140 = scmp.eq.s32.totalorder %s21, 0
      %p141 = por %p139, %p140
      %p142 = scmp.ne.s32.totalorder %s128, %s129
      %p143 = scmp.eq.s32.totalorder %s22, 3
      %p144 = por %p142, %p143
      %p146 = scmp.ne.s32.totalorder %s129, %s145
      %p147 = scmp.eq.s32.totalorder %s22, 0
      %p148 = por %p146, %p147
      %s149 = ssub.s32 %s23, %s42
      %s150 = ssub.s32 %s24, %s38
      %s151 = sor.u32 %s149, %s150
      %p152 = scmp.eq.s32.totalorder %s151, 0
      %s154 = sadd.s32 %s153, 1
      %s155 = scalar_select %p152, %s153, %s154
      %p158 = pneg %p152
      %p159 = scmp.eq.s32.totalorder %s16, 3
      %p160 = por %p158, %p159
      %p161 = scmp.ne.s32.totalorder %s153, %s156
      %p162 = scmp.eq.s32.totalorder %s16, 0
      %p163 = por %p161, %p162
      %p164 = scmp.ne.s32.totalorder %s153, %s156
      %p165 = scmp.eq.s32.totalorder %s21, 3
      %p166 = por %p164, %p165
      %p167 = scmp.ne.s32.totalorder %s156, %s157
      %p168 = scmp.eq.s32.totalorder %s21, 0
      %p169 = por %p167, %p168
      %p170 = scmp.ne.s32.totalorder %s156, %s157
      %p171 = scmp.eq.s32.totalorder %s22, 3
      %p172 = por %p170, %p171
      %p174 = scmp.ne.s32.totalorder %s157, %s173
      %p175 = scmp.eq.s32.totalorder %s22, 0
      %p176 = por %p174, %p175
      %p177 = scmp.le.s32.totalorder 1, %s16
      %p178 = scmp.lt.s32.totalorder %s16, 5
      %p179 = pnand %p177, %p178
      %p180 = pneg %p179
      // Predicated region
      $region9: #{tpu_custom_call.1} parent=5 // pred_check
        _
      $region10: #{tpu_custom_call.1} parent=5 // pred_check_branch
        %182 = sbr.rel (%p179) target = $region12
      $region11: #{tpu_custom_call.1} parent=5 // pred_region
        %s183 = ssub.s32 %s16, 1
        // Predicated region
        $region13: #{tpu_custom_call.1} parent=11 // pred_check
          %p184 = pneg %p56
        $region14: #{tpu_custom_call.1} parent=11 // pred_check_branch
          %186 = sbr.rel (%p184) target = $region16
        $region15: #{tpu_custom_call.1} parent=11 // pred_region
          _
        $region16: #{tpu_custom_call.1} parent=11 // pred_fallthru
          _
        // Predicated region
        $region17: #{tpu_custom_call.1} parent=11 // pred_check
          %p187 = pneg %p77
        $region18: #{tpu_custom_call.1} parent=11 // pred_check_branch
          %189 = sbr.rel (%p187) target = $region20
        $region19: #{tpu_custom_call.1} parent=11 // pred_region
          _
        $region20: #{tpu_custom_call.1} parent=11 // pred_fallthru
          _
      $region12: #{tpu_custom_call.1} parent=5 // pred_fallthru
        _
      %p190 = scmp.lt.s32.totalorder %s16, 4
      // Predicated region
      $region21: #{tpu_custom_call.1} parent=5 // pred_check
        %p191 = pneg %p190
      $region22: #{tpu_custom_call.1} parent=5 // pred_check_branch
        %193 = sbr.rel (%p191) target = $region24
      $region23: #{tpu_custom_call.1} parent=5 // pred_region
        // Predicated region
        $region25: #{tpu_custom_call.1} parent=23 // pred_check
          %p194 = pneg %p103
        $region26: #{tpu_custom_call.1} parent=23 // pred_check_branch
          %196 = sbr.rel (%p194) target = $region28
        $region27: #{tpu_custom_call.1} parent=23 // pred_region
          %s197 = sand.u32 %s93, 1
          %s198 = scalar_lea.sflag [#allocation4], %s197
          %s199 = sand.u32 %s93, 1
          %s200 = smul.addr %s199, 4
          %s201 = scalar_lea.vmem [#allocation3], %s200
          %s202 = smul.u32 %s24, 2
          %s203 = sadd.s32 %s202, %s25
          %s205 = ssub.s32 64, 64
          %206 = vsyncadd %s198, %s205
          %s207 = smul.addr %s23, 2
          %s208 = sadd.s32 %s203, %s207
          %s209 = smul.addr %s208, 64
          %s210 = scalar_lea.hbm %s2, %s209
          %s212 = sshll.u32 %s201, 4
          %s213 = int_to_ptr.vmem [resolvable:$true] %s212
          %215 = dma.hbm_to_vmem [thread:$0]  %s210, 64, %s213, %s198
        $region28: #{tpu_custom_call.1} parent=23 // pred_fallthru
          _
        // Predicated region
        $region29: #{tpu_custom_call.1} parent=23 // pred_check
          %p216 = pneg %p135
        $region30: #{tpu_custom_call.1} parent=23 // pred_check_branch
          %218 = sbr.rel (%p216) target = $region32
        $region31: #{tpu_custom_call.1} parent=23 // pred_region
          %s219 = smul.u32 %s24, 2
          %s220 = sadd.s32 %s219, %s25
          %p221 = scmp.lt.s32.totalorder %s23, 1
          %s222 = scalar_select %p221, %s23, 1
          %p223 = scmp.lt.s32.totalorder %s220, 1
          %s224 = scalar_select %p223, %s220, 1
          %s225 = smul.addr %s222, 2
          %s226 = sadd.s32 %s224, %s225
          %s227 = smul.addr %s226, 8
          %s228 = scalar_lea.vmem %s3, %s227
          %s229 = smul.u32 %s24, 2
          %s230 = sadd.s32 %s229, %s25
        $region32: #{tpu_custom_call.1} parent=23 // pred_fallthru
          _
      $region24: #{tpu_custom_call.1} parent=5 // pred_fallthru
        _
      %p231 = scmp.le.s32.totalorder 1, %s16
      %p232 = scmp.lt.s32.totalorder %s16, 5
      %p233 = pnand %p231, %p232
      %p234 = pneg %p233
      // Predicated region
      $region33: #{tpu_custom_call.1} parent=5 // pred_check
        _
      $region34: #{tpu_custom_call.1} parent=5 // pred_check_branch
        %236 = sbr.rel (%p233) target = $region36
      $region35: #{tpu_custom_call.1} parent=5 // pred_region
        %s237 = ssub.s32 %s16, 1
        %s238 = sand.u32 %s96, 1
        %s239 = scalar_lea.sflag [#allocation4], %s238
        %s240 = sand.u32 %s96, 1
        %s241 = smul.addr %s240, 4
        %s242 = scalar_lea.vmem [#allocation3], %s241
        // Predicated region
        $region37: #{tpu_custom_call.1} parent=35 // pred_check
          %p243 = pneg %p109
        $region38: #{tpu_custom_call.1} parent=35 // pred_check_branch
          %245 = sbr.rel (%p243) target = $region40
        $region39: #{tpu_custom_call.1} parent=35 // pred_region
          %246 = dma.done %s239, 64
        $region40: #{tpu_custom_call.1} parent=35 // pred_fallthru
          _
        %p247 = pneg %p56
        %p248 = pneg %p53
        %p249 = pneg %p77
        %p250 = pneg %p74
        %s251 = sand.u32 %s96, 1
        %s252 = scalar_lea.sflag [#allocation4], %s251
        %s253 = sand.u32 %s96, 1
        %s254 = smul.addr %s253, 4
        %s255 = scalar_lea.vmem [#allocation3], %s254
        %p256 = pneg %p109
        %p257 = pneg %p106
        %s258 = smul.u32 %s27, 2
        %s259 = sadd.s32 %s258, %s28
        %p260 = scmp.lt.s32.totalorder %s26, 1
        %s261 = scalar_select %p260, %s26, 1
        %p262 = scmp.lt.s32.totalorder %s259, 1
        %s263 = scalar_select %p262, %s259, 1
        %s264 = smul.addr %s261, 2
        %s265 = sadd.s32 %s263, %s264
        %s266 = smul.addr %s265, 8
        %s267 = scalar_lea.vmem %s3, %s266
        %p268 = pneg %p141
        %p269 = pneg %p138
        %p270 = pneg %p169
        %p271 = pneg %p166
        %s272 = sand.u32 %s156, 1
        %s273 = scalar_lea.sflag [#allocation5], %s272
        %s274 = sand.u32 %s156, 1
        %s275 = smul.addr %s274, 8
        %s276 = scalar_lea.vmem [#allocation6], %s275
        %s277 = smul.u32 %s27, 2
        %s278 = sadd.s32 %s277, %s28
        %s279 = smul.u32 %s27, 2
        %s280 = sadd.s32 %s279, %s28
        %p281 = scmp.lt.s32.totalorder %s26, 1
        %s282 = scalar_select %p281, %s26, 1
        %p283 = scmp.lt.s32.totalorder %s280, 1
        %s284 = scalar_select %p283, %s280, 1
        %s285 = smul.addr %s282, 2
        %s286 = sadd.s32 %s284, %s285
        %s287 = smul.addr %s286, 8
        %s288 = scalar_lea.vmem %s3, %s287
        %s289 = smul.u32 %s27, 2
        %s290 = sadd.s32 %s289, %s28
        %p291 = scmp.eq.s32.totalorder %s28, 0
        // Predicated region
        $region41: #{tpu_custom_call.1} parent=35 // pred_check
          %p292 = pneg %p291
        $region42: #{tpu_custom_call.1} parent=35 // pred_check_branch
          %294 = sbr.rel (%p292) target = $region44
        $region43: #{tpu_custom_call.1} parent=35 // pred_region
          %295 = vst [vmem:[#allocation2] sm:$0xff] 0.0
        $region44: #{tpu_custom_call.1} parent=35 // pred_fallthru
          _
        %v296 = vld [vmem:[%s0] sm:$0xff]
        %v297 = vld [vmem:[%s1] sm:$0xff]
        %299 = vset.pattern.permute.xlu0 0
        %300 = vperm.xlu0 %299, %v297
        %v301 = vpop.permute.xlu0 %300
        %v303 = vld [vmem:[%s242] sm:$0xf]
        %v304 = vld [vmem:[%s288] sm:$0xff]
        %306 = vset.pattern.permute.xlu0 0
        %307 = vperm.xlu0 %306, %v296
        %v308 = vpop.permute.xlu0 %307
        %v310 = vlaneseq
        %v311 = vshrl.u32 %v310, 7
        %v312 = vsub.s32 0, %v311
        %v313 = vrot.slane %v303, %v312
        %v314 = vmul.f32 %v308, %v313
        %v315 = vadd.f32 %v301, %v314
        %316 = vset.pattern.permute.xlu0 1
        %317 = vperm.xlu0 %316, %v296
        %v318 = vpop.permute.xlu0 %317
        %v320 = vlaneseq
        %v321 = vshrl.u32 %v320, 7
        %v322 = vsub.s32 1, %v321
        %v323 = vrot.slane %v303, %v322
        %v324 = vmul.f32 %v318, %v323
        %v325 = vadd.f32 %v315, %v324
        %326 = vset.pattern.permute.xlu0 2
        %327 = vperm.xlu0 %326, %v296
        %v328 = vpop.permute.xlu0 %327
        %v330 = vlaneseq
        %v331 = vshrl.u32 %v330, 7
        %v332 = vsub.s32 2, %v331
        %v333 = vrot.slane %v303, %v332
        %v334 = vmul.f32 %v328, %v333
        %v335 = vadd.f32 %v325, %v334
        %336 = vset.pattern.permute.xlu0 3
        %337 = vperm.xlu0 %336, %v296
        %v338 = vpop.permute.xlu0 %337
        %v340 = vlaneseq
        %v341 = vshrl.u32 %v340, 7
        %v342 = vsub.s32 3, %v341
        %v343 = vrot.slane %v303, %v342
        %v344 = vmul.f32 %v338, %v343
        %v345 = vadd.f32 %v335, %v344
        %v346 = vsub.f32 %v345, %v304
        %v347 = vmul.f32 %v346, %v346
        %v348 = vld [vmem:[#allocation2] sm:$0xff]
        %v349 = vadd.f32 %v348, %v347
        %350 = vst [vmem:[#allocation2] sm:$0xff] %v349
        %p351 = scmp.eq.s32.totalorder %s28, 1
        // Predicated region
        $region45: #{tpu_custom_call.1} parent=35 // pred_check
          %p352 = pneg %p351
        $region46: #{tpu_custom_call.1} parent=35 // pred_check_branch
          %354 = sbr.rel (%p352) target = $region48
        $region47: #{tpu_custom_call.1} parent=35 // pred_region
          %v355 = vld [vmem:[#allocation2] sm:$0xff]
          %356 = vst [vmem:[%s276] sm:$0xff] %v355
        $region48: #{tpu_custom_call.1} parent=35 // pred_fallthru
          _
        %s357 = sand.u32 %s156, 1
        %s358 = scalar_lea.sflag [#allocation5], %s357
        %s359 = sand.u32 %s156, 1
        %s360 = smul.addr %s359, 8
        %s361 = scalar_lea.vmem [#allocation6], %s360
        // Predicated region
        $region49: #{tpu_custom_call.1} parent=35 // pred_check
          %p362 = pneg %p166
        $region50: #{tpu_custom_call.1} parent=35 // pred_check_branch
          %364 = sbr.rel (%p362) target = $region52
        $region51: #{tpu_custom_call.1} parent=35 // pred_region
          %s366 = ssub.s32 128, 128
          %367 = vsyncadd %s358, %s366
          %s368 = sadd.s32 %s27, %s26
          %s369 = smul.addr %s368, 128
          %s370 = scalar_lea.hbm %s4, %s369
          %s372 = sshll.u32 %s361, 4
          %s373 = int_to_ptr.vmem [resolvable:$true] %s372
          %375 = dma.vmem_to_hbm [thread:$0]  %s373, 128, %s370, %s358
        $region52: #{tpu_custom_call.1} parent=35 // pred_fallthru
          _
      $region36: #{tpu_custom_call.1} parent=5 // pred_fallthru
        _
      %p376 = scmp.le.s32.totalorder 2, %s16
      // Predicated region
      $region53: #{tpu_custom_call.1} parent=5 // pred_check
        %p377 = pneg %p376
      $region54: #{tpu_custom_call.1} parent=5 // pred_check_branch
        %379 = sbr.rel (%p377) target = $region56
      $region55: #{tpu_custom_call.1} parent=5 // pred_region
        %s380 = ssub.s32 %s16, 2
        // Predicated region
        $region57: #{tpu_custom_call.1} parent=55 // pred_check
          %p381 = pneg %p172
        $region58: #{tpu_custom_call.1} parent=55 // pred_check_branch
          %383 = sbr.rel (%p381) target = $region60
        $region59: #{tpu_custom_call.1} parent=55 // pred_region
          %s384 = sand.u32 %s157, 1
          %s385 = scalar_lea.sflag [#allocation5], %s384
          %s386 = sand.u32 %s157, 1
          %s387 = smul.addr %s386, 8
          %s388 = scalar_lea.vmem [#allocation6], %s387
          %389 = dma.done %s385, 128
        $region60: #{tpu_custom_call.1} parent=55 // pred_fallthru
          _
      $region56: #{tpu_custom_call.1} parent=5 // pred_fallthru
        _
    $region6: #{tpu_custom_call.1} parent=1 // loop_footer
      %s20 = sadd.s32 1, %s16
    $region7: #{tpu_custom_call.1} parent=1 // loop_footer_branch
      %15 = sbr.rel target = $region3
    $region8: #{tpu_custom_call.1} parent=1 // loop_exit
      _
    %390 = vsyncpa [#allocation4], 1
    %s391 = scalar_lea.sflag [#allocation4], 1
    %392 = vsyncpa %s391, 1
    %393 = vsyncpa [#allocation5], 1
    %s394 = scalar_lea.sflag [#allocation5], 1
    %395 = vsyncpa %s394, 1

</llo_original>
